<compile_context>
chip_gen: v5e
topology: v5e:2x2
jax: 0.10.0
libtpu: 0.0.40
codegen_flags: <defaults>
</compile_context>

<pallas_src>
import functools

import jax
import jax.numpy as jnp
from jax.experimental import pallas as pl
from jax.experimental.pallas import tpu as pltpu


def _round_up(x, m):
    return ((x + m - 1) // m) * m


def _self_attention_kernel(x_ref, wqkv_ref, wout_ref, bout_ref, o_ref, *,
                           heads, dim_heads, batch_tile, seq_len):
    # x_ref:    (batch_tile * seq_len, dim_pad)   lane-dense input rows
    # wqkv_ref: (dim_pad, 3*dh)                   fused [Wq*scale | Wk | Wv]
    # wout_ref: (dh, dim_pad)                     output projection (lane-dense cols)
    # bout_ref: (1, dim_pad)
    # o_ref:    (batch_tile * seq_len, dim_pad)
    dh = heads * dim_heads
    m = batch_tile * seq_len
    dim_pad = o_ref.shape[1]

    x = x_ref[...]                                                       # (m, dim_pad)
    # Fused QKV projection: one MXU pass, M = batch_tile*t, N = 3*dh.
    qkv = jnp.dot(x, wqkv_ref[...], preferred_element_type=jnp.float32)  # (m, 3*dh)
    # Leading-dim-only split back into (bt, t, 3*dh): cheap (minor dim untouched).
    qkv3 = qkv.reshape(batch_tile, seq_len, 3 * dh)

    acc = jnp.zeros((m, dim_pad), jnp.float32)
    for h in range(heads):  # static unroll; heads is small (e.g. 4 or 12)
        lo = h * dim_heads
        qh = qkv3[:, :, lo:lo + dim_heads]                    # (bt, t, e), scale pre-folded
        kh = qkv3[:, :, dh + lo:dh + lo + dim_heads]
        vh = qkv3[:, :, 2 * dh + lo:2 * dh + lo + dim_heads]

        # Batched dots over the batch-tile axis; contraction on e (no explicit .T).
        s = jnp.einsum('bie,bje->bij', qh, kh,
                       preferred_element_type=jnp.float32)               # (bt, t, t)
        s = s - jnp.max(s, axis=-1, keepdims=True)
        p = jnp.exp(s)
        p = p * pl.reciprocal(jnp.sum(p, axis=-1, keepdims=True), approx=True)

        oh = jnp.einsum('bij,bje->bie', p, vh,
                        preferred_element_type=jnp.float32)              # (bt, t, e)

        # Fold this head straight into the output projection (no concat over heads):
        #   out = sum_h oh @ Wout[h*e:(h+1)*e, :]
        acc = acc + jnp.dot(oh.reshape(m, dim_heads), wout_ref[lo:lo + dim_heads, :],
                            preferred_element_type=jnp.float32)          # (m, dim_pad)

    o_ref[...] = (acc + bout_ref[...]).astype(o_ref.dtype)


def self_attention_pallas(x, wq, wkv, wout, bout, *, heads, dim_heads, batch_tile=None):
    """x: (b, t, dim); wq: (dim, dh); wkv: (dim, 2*dh); wout: (dh, dim); bout: (dim,)."""
    b, t, dim = x.shape
    dh = heads * dim_heads
    dim_pad = _round_up(dim, 128)      # lane-dense loads/stores

    # Batch tiling: amortize per-grid-step overhead over several batch rows while
    # keeping >= 2 "parallel" programs when b >= 2 (v7x has 2 TensorCores per chip).
    if batch_tile is None:
        batch_tile = min(b, 8)
        if pl.cdiv(b, batch_tile) < 2 and b >= 2:
            batch_tile = pl.cdiv(b, 2)
    num_tiles = pl.cdiv(b, batch_tile)
    rows_per_tile = batch_tile * t
    if rows_per_tile % 8 != 0 and num_tiles > 1:
        # Keep the block layout-legal (second-minor must be 8-aligned or full-extent).
        batch_tile, num_tiles, rows_per_tile = b, 1, b * t
    total_rows = num_tiles * rows_per_tile

    # Row-flattened, lane-dense (zero-padded) input slab.  Padded rows are zeros;
    # their outputs land in padded output rows and are sliced off below.
    x2 = x.reshape(b * t, dim)
    x2 = jnp.pad(x2, ((0, total_rows - b * t), (0, dim_pad - dim)))

    # Fused QKV weights, with the 1/sqrt(e) scale folded into the q columns;
    # zero-pad the contraction dim to match the padded input.
    scale = float(dim_heads) ** (-0.5)
    wqkv = jnp.concatenate([wq * scale, wkv], axis=1)         # (dim, 3*dh)  [q|k|v]
    wqkv = jnp.pad(wqkv, ((0, dim_pad - dim), (0, 0)))        # (dim_pad, 3*dh)
    wout_p = jnp.pad(wout, ((0, 0), (0, dim_pad - dim)))      # (dh, dim_pad)
    bout_p = jnp.pad(bout.reshape(1, dim), ((0, 0), (0, dim_pad - dim)))

    kernel = functools.partial(_self_attention_kernel, heads=heads,
                               dim_heads=dim_heads, batch_tile=batch_tile, seq_len=t)

    out_pad = pl.pallas_call(
        kernel,
        out_shape=jax.ShapeDtypeStruct((total_rows, dim_pad), x.dtype),
        grid_spec=pltpu.PrefetchScalarGridSpec(
            num_scalar_prefetch=0,
            grid=(num_tiles,),
            in_specs=[
                pl.BlockSpec((rows_per_tile, dim_pad), lambda i: (i, 0)),
                pl.BlockSpec((dim_pad, 3 * dh), lambda i: (0, 0)),
                pl.BlockSpec((dh, dim_pad), lambda i: (0, 0)),
                pl.BlockSpec((1, dim_pad), lambda i: (0, 0)),
            ],
            out_specs=pl.BlockSpec((rows_per_tile, dim_pad), lambda i: (i, 0)),
        ),
        compiler_params=pltpu.CompilerParams(
            dimension_semantics=("parallel",)),
    )(x2, wqkv, wout_p, bout_p)

    return out_pad[:b * t, :dim].reshape(b, t, dim)


def self_attention_ref(x, wq, wkv, wout, bout, *, heads, dim_heads):
    """Pure-JAX reference matching the PyTorch forward exactly."""
    b, t, _ = x.shape
    dh = heads * dim_heads
    q = x @ wq                      # (b, t, dh)
    kv = x @ wkv                    # (b, t, 2*dh)
    k, v = kv[..., :dh], kv[..., dh:]

    def merge(z):  # (b, t, dh) -> (b*h, t, e)
        return z.reshape(b, t, heads, dim_heads).transpose(0, 2, 1, 3).reshape(
            b * heads, t, dim_heads)

    q, k, v = merge(q), merge(k), merge(v)
    dots = jnp.einsum('bie,bje->bij', q, k) * (dim_heads ** -0.5)
    dots = jax.nn.softmax(dots, axis=-1)
    out = jnp.einsum('bij,bje->bie', dots, v)
    out = out.reshape(b, heads, t, dim_heads).transpose(0, 2, 1, 3).reshape(b, t, dh)
    return out @ wout + bout


if __name__ == "__main__":
    # Small shapes consistent with the module's forward (axial rows of length t).
    b, t, dim = 2, 8, 32
    heads = 4
    dim_heads = dim // heads          # 8
    dh = heads * dim_heads            # 32 (dim_hidden)

    key = jax.random.PRNGKey(0)
    kx, kq, kkv, kwo, kbo = jax.random.split(key, 5)

    x = jax.random.normal(kx, (b, t, dim), dtype=jnp.float32)
    # Deterministic synthetic parameters (stored as (in, out) = PyTorch weight transposed).
    wq = jax.random.normal(kq, (dim, dh), dtype=jnp.float32) * 0.1
    wkv = jax.random.normal(kkv, (dim, 2 * dh), dtype=jnp.float32) * 0.1
    wout = jax.random.normal(kwo, (dh, dim), dtype=jnp.float32) * 0.1
    bout = jax.random.normal(kbo, (dim,), dtype=jnp.float32) * 0.1

    out = self_attention_pallas(x, wq, wkv, wout, bout, heads=heads, dim_heads=dim_heads)
    out = jax.block_until_ready(out)

    ref = self_attention_ref(x, wq, wkv, wout, bout, heads=heads, dim_heads=dim_heads)
    assert out.shape == (b, t, dim)
    max_err = jnp.max(jnp.abs(out - ref))
    # Tolerance accounts for the EUP approximate reciprocal in the softmax denominator.
    assert jnp.allclose(out, ref, atol=2e-3, rtol=2e-3), f"mismatch, max abs err={max_err}"

    print("KERNEL_OK")
</pallas_src>

<mosaic_0001>
module attributes {stable_mosaic.version = 11 : i64} {
  func.func @_self_attention_kernel(%arg0: i32, %arg1: memref<8x128xf32, #tpu.memory_space<vmem>>, %arg2: memref<128x96xf32, #tpu.memory_space<vmem>>, %arg3: memref<32x128xf32, #tpu.memory_space<vmem>>, %arg4: memref<1x128xf32, #tpu.memory_space<vmem>>, %arg5: memref<8x128xf32, #tpu.memory_space<vmem>>) attributes {dimension_semantics = [#tpu.dimension_semantics<parallel>], iteration_bounds = array<i64: 2>, scalar_prefetch = 0 : i64, scratch_operands = 0 : i64, tpu.core_type = #tpu.core_type<tc>, window_params = [{transform_indices = @transform_0, window_bounds = array<i64: 8, 128>}, {pipeline_mode = #tpu.pipeline_mode<synchronous>, transform_indices = @transform_1, window_bounds = array<i64: 128, 96>}, {pipeline_mode = #tpu.pipeline_mode<synchronous>, transform_indices = @transform_2, window_bounds = array<i64: 32, 128>}, {pipeline_mode = #tpu.pipeline_mode<synchronous>, transform_indices = @transform_3, window_bounds = array<i64: 1, 128>}, {transform_indices = @transform_4, window_bounds = array<i64: 8, 128>}]} {
    %c0 = arith.constant 0 : index
    %c0_0 = arith.constant 0 : index
    %0 = vector.load %arg1[%c0, %c0_0] : memref<8x128xf32, #tpu.memory_space<vmem>>, vector<8x128xf32>
    %c0_1 = arith.constant 0 : index
    %c0_2 = arith.constant 0 : index
    %1 = vector.load %arg2[%c0_1, %c0_2] : memref<128x96xf32, #tpu.memory_space<vmem>>, vector<128x96xf32>
    %cst = arith.constant dense<0.000000e+00> : vector<8x96xf32>
    %2 = tpu.matmul %0, %1, %cst {dimension_numbers = #tpu.dot_dimension_numbers<[1], [0], [0], [1], [0, 0, 1, 1], [], []>} : vector<8x128xf32>, vector<128x96xf32>, vector<8x96xf32> -> vector<8x96xf32>
    %3 = vector.shape_cast %2 : vector<8x96xf32> to vector<1x8x96xf32>
    %cst_3 = arith.constant 0.000000e+00 : f32
    %4 = vector.broadcast %cst_3 : f32 to vector<8x128xf32>
    %5 = vector.extract_strided_slice %3 {offsets = [0, 0, 0], sizes = [1, 8, 8], strides = [1, 1, 1]} : vector<1x8x96xf32> to vector<1x8x8xf32>
    %6 = vector.extract_strided_slice %3 {offsets = [0, 0, 32], sizes = [1, 8, 8], strides = [1, 1, 1]} : vector<1x8x96xf32> to vector<1x8x8xf32>
    %7 = vector.extract_strided_slice %3 {offsets = [0, 0, 64], sizes = [1, 8, 8], strides = [1, 1, 1]} : vector<1x8x96xf32> to vector<1x8x8xf32>
    "tpu.trace_start"() <{level = 10 : i32, message = "bie,bje->bij"}> : () -> ()
    %cst_4 = arith.constant dense<0.000000e+00> : vector<1x8x8xf32>
    %8 = tpu.matmul %5, %6, %cst_4 {dimension_numbers = #tpu.dot_dimension_numbers<[2], [2], [1], [1], [0, 0, 0, 1, 1, 1], [0], [0]>} : vector<1x8x8xf32>, vector<1x8x8xf32>, vector<1x8x8xf32> -> vector<1x8x8xf32>
    "tpu.trace_stop"() : () -> ()
    %cst_5 = arith.constant dense<0xFF800000> : vector<1x8xf32>
    %9 = vector.multi_reduction <maximumf>, %8, %cst_5 [2] : vector<1x8x8xf32> to vector<1x8xf32>
    %10 = vector.shape_cast %9 : vector<1x8xf32> to vector<1x8x1xf32>
    %11 = vector.broadcast %10 : vector<1x8x1xf32> to vector<1x8x8xf32>
    %12 = arith.subf %8, %11 : vector<1x8x8xf32>
    %13 = math.exp %12 : vector<1x8x8xf32>
    %cst_6 = arith.constant dense<0.000000e+00> : vector<1x8xf32>
    %14 = vector.multi_reduction <add>, %13, %cst_6 [2] : vector<1x8x8xf32> to vector<1x8xf32>
    %15 = vector.shape_cast %14 : vector<1x8xf32> to vector<1x8x1xf32>
    %16 = tpu.reciprocal %15 {approx = true} : vector<1x8x1xf32> -> vector<1x8x1xf32>
    %17 = vector.broadcast %16 : vector<1x8x1xf32> to vector<1x8x8xf32>
    %18 = arith.mulf %13, %17 : vector<1x8x8xf32>
    "tpu.trace_start"() <{level = 10 : i32, message = "bij,bje->bie"}> : () -> ()
    %cst_7 = arith.constant dense<0.000000e+00> : vector<1x8x8xf32>
    %19 = tpu.matmul %18, %7, %cst_7 {dimension_numbers = #tpu.dot_dimension_numbers<[2], [1], [1], [2], [0, 0, 0, 1, 1, 2], [0], [0]>} : vector<1x8x8xf32>, vector<1x8x8xf32>, vector<1x8x8xf32> -> vector<1x8x8xf32>
    "tpu.trace_stop"() : () -> ()
    %20 = vector.shape_cast %19 : vector<1x8x8xf32> to vector<8x8xf32>
    %c0_8 = arith.constant 0 : index
    %c0_9 = arith.constant 0 : index
    %21 = vector.load %arg3[%c0_8, %c0_9] : memref<32x128xf32, #tpu.memory_space<vmem>>, vector<8x128xf32>
    %cst_10 = arith.constant dense<0.000000e+00> : vector<8x128xf32>
    %22 = tpu.matmul %20, %21, %cst_10 {dimension_numbers = #tpu.dot_dimension_numbers<[1], [0], [0], [1], [0, 0, 1, 1], [], []>} : vector<8x8xf32>, vector<8x128xf32>, vector<8x128xf32> -> vector<8x128xf32>
    %23 = arith.addf %4, %22 : vector<8x128xf32>
    %24 = vector.extract_strided_slice %3 {offsets = [0, 0, 8], sizes = [1, 8, 8], strides = [1, 1, 1]} : vector<1x8x96xf32> to vector<1x8x8xf32>
    %25 = vector.extract_strided_slice %3 {offsets = [0, 0, 40], sizes = [1, 8, 8], strides = [1, 1, 1]} : vector<1x8x96xf32> to vector<1x8x8xf32>
    %26 = vector.extract_strided_slice %3 {offsets = [0, 0, 72], sizes = [1, 8, 8], strides = [1, 1, 1]} : vector<1x8x96xf32> to vector<1x8x8xf32>
    "tpu.trace_start"() <{level = 10 : i32, message = "bie,bje->bij"}> : () -> ()
    %cst_11 = arith.constant dense<0.000000e+00> : vector<1x8x8xf32>
    %27 = tpu.matmul %24, %25, %cst_11 {dimension_numbers = #tpu.dot_dimension_numbers<[2], [2], [1], [1], [0, 0, 0, 1, 1, 1], [0], [0]>} : vector<1x8x8xf32>, vector<1x8x8xf32>, vector<1x8x8xf32> -> vector<1x8x8xf32>
    "tpu.trace_stop"() : () -> ()
    %cst_12 = arith.constant dense<0xFF800000> : vector<1x8xf32>
    %28 = vector.multi_reduction <maximumf>, %27, %cst_12 [2] : vector<1x8x8xf32> to vector<1x8xf32>
    %29 = vector.shape_cast %28 : vector<1x8xf32> to vector<1x8x1xf32>
    %30 = vector.broadcast %29 : vector<1x8x1xf32> to vector<1x8x8xf32>
    %31 = arith.subf %27, %30 : vector<1x8x8xf32>
    %32 = math.exp %31 : vector<1x8x8xf32>
    %cst_13 = arith.constant dense<0.000000e+00> : vector<1x8xf32>
    %33 = vector.multi_reduction <add>, %32, %cst_13 [2] : vector<1x8x8xf32> to vector<1x8xf32>
    %34 = vector.shape_cast %33 : vector<1x8xf32> to vector<1x8x1xf32>
    %35 = tpu.reciprocal %34 {approx = true} : vector<1x8x1xf32> -> vector<1x8x1xf32>
    %36 = vector.broadcast %35 : vector<1x8x1xf32> to vector<1x8x8xf32>
    %37 = arith.mulf %32, %36 : vector<1x8x8xf32>
    "tpu.trace_start"() <{level = 10 : i32, message = "bij,bje->bie"}> : () -> ()
    %cst_14 = arith.constant dense<0.000000e+00> : vector<1x8x8xf32>
    %38 = tpu.matmul %37, %26, %cst_14 {dimension_numbers = #tpu.dot_dimension_numbers<[2], [1], [1], [2], [0, 0, 0, 1, 1, 2], [0], [0]>} : vector<1x8x8xf32>, vector<1x8x8xf32>, vector<1x8x8xf32> -> vector<1x8x8xf32>
    "tpu.trace_stop"() : () -> ()
    %39 = vector.shape_cast %38 : vector<1x8x8xf32> to vector<8x8xf32>
    %c8 = arith.constant 8 : index
    %c0_15 = arith.constant 0 : index
    %40 = vector.load %arg3[%c8, %c0_15] : memref<32x128xf32, #tpu.memory_space<vmem>>, vector<8x128xf32>
    %cst_16 = arith.constant dense<0.000000e+00> : vector<8x128xf32>
    %41 = tpu.matmul %39, %40, %cst_16 {dimension_numbers = #tpu.dot_dimension_numbers<[1], [0], [0], [1], [0, 0, 1, 1], [], []>} : vector<8x8xf32>, vector<8x128xf32>, vector<8x128xf32> -> vector<8x128xf32>
    %42 = arith.addf %23, %41 : vector<8x128xf32>
    %43 = vector.extract_strided_slice %3 {offsets = [0, 0, 16], sizes = [1, 8, 8], strides = [1, 1, 1]} : vector<1x8x96xf32> to vector<1x8x8xf32>
    %44 = vector.extract_strided_slice %3 {offsets = [0, 0, 48], sizes = [1, 8, 8], strides = [1, 1, 1]} : vector<1x8x96xf32> to vector<1x8x8xf32>
    %45 = vector.extract_strided_slice %3 {offsets = [0, 0, 80], sizes = [1, 8, 8], strides = [1, 1, 1]} : vector<1x8x96xf32> to vector<1x8x8xf32>
    "tpu.trace_start"() <{level = 10 : i32, message = "bie,bje->bij"}> : () -> ()
    %cst_17 = arith.constant dense<0.000000e+00> : vector<1x8x8xf32>
    %46 = tpu.matmul %43, %44, %cst_17 {dimension_numbers = #tpu.dot_dimension_numbers<[2], [2], [1], [1], [0, 0, 0, 1, 1, 1], [0], [0]>} : vector<1x8x8xf32>, vector<1x8x8xf32>, vector<1x8x8xf32> -> vector<1x8x8xf32>
    "tpu.trace_stop"() : () -> ()
    %cst_18 = arith.constant dense<0xFF800000> : vector<1x8xf32>
    %47 = vector.multi_reduction <maximumf>, %46, %cst_18 [2] : vector<1x8x8xf32> to vector<1x8xf32>
    %48 = vector.shape_cast %47 : vector<1x8xf32> to vector<1x8x1xf32>
    %49 = vector.broadcast %48 : vector<1x8x1xf32> to vector<1x8x8xf32>
    %50 = arith.subf %46, %49 : vector<1x8x8xf32>
    %51 = math.exp %50 : vector<1x8x8xf32>
    %cst_19 = arith.constant dense<0.000000e+00> : vector<1x8xf32>
    %52 = vector.multi_reduction <add>, %51, %cst_19 [2] : vector<1x8x8xf32> to vector<1x8xf32>
    %53 = vector.shape_cast %52 : vector<1x8xf32> to vector<1x8x1xf32>
    %54 = tpu.reciprocal %53 {approx = true} : vector<1x8x1xf32> -> vector<1x8x1xf32>
    %55 = vector.broadcast %54 : vector<1x8x1xf32> to vector<1x8x8xf32>
    %56 = arith.mulf %51, %55 : vector<1x8x8xf32>
    "tpu.trace_start"() <{level = 10 : i32, message = "bij,bje->bie"}> : () -> ()
    %cst_20 = arith.constant dense<0.000000e+00> : vector<1x8x8xf32>
    %57 = tpu.matmul %56, %45, %cst_20 {dimension_numbers = #tpu.dot_dimension_numbers<[2], [1], [1], [2], [0, 0, 0, 1, 1, 2], [0], [0]>} : vector<1x8x8xf32>, vector<1x8x8xf32>, vector<1x8x8xf32> -> vector<1x8x8xf32>
    "tpu.trace_stop"() : () -> ()
    %58 = vector.shape_cast %57 : vector<1x8x8xf32> to vector<8x8xf32>
    %c16 = arith.constant 16 : index
    %c0_21 = arith.constant 0 : index
    %59 = vector.load %arg3[%c16, %c0_21] : memref<32x128xf32, #tpu.memory_space<vmem>>, vector<8x128xf32>
    %cst_22 = arith.constant dense<0.000000e+00> : vector<8x128xf32>
    %60 = tpu.matmul %58, %59, %cst_22 {dimension_numbers = #tpu.dot_dimension_numbers<[1], [0], [0], [1], [0, 0, 1, 1], [], []>} : vector<8x8xf32>, vector<8x128xf32>, vector<8x128xf32> -> vector<8x128xf32>
    %61 = arith.addf %42, %60 : vector<8x128xf32>
    %62 = vector.extract_strided_slice %3 {offsets = [0, 0, 24], sizes = [1, 8, 8], strides = [1, 1, 1]} : vector<1x8x96xf32> to vector<1x8x8xf32>
    %63 = vector.extract_strided_slice %3 {offsets = [0, 0, 56], sizes = [1, 8, 8], strides = [1, 1, 1]} : vector<1x8x96xf32> to vector<1x8x8xf32>
    %64 = vector.extract_strided_slice %3 {offsets = [0, 0, 88], sizes = [1, 8, 8], strides = [1, 1, 1]} : vector<1x8x96xf32> to vector<1x8x8xf32>
    "tpu.trace_start"() <{level = 10 : i32, message = "bie,bje->bij"}> : () -> ()
    %cst_23 = arith.constant dense<0.000000e+00> : vector<1x8x8xf32>
    %65 = tpu.matmul %62, %63, %cst_23 {dimension_numbers = #tpu.dot_dimension_numbers<[2], [2], [1], [1], [0, 0, 0, 1, 1, 1], [0], [0]>} : vector<1x8x8xf32>, vector<1x8x8xf32>, vector<1x8x8xf32> -> vector<1x8x8xf32>
    "tpu.trace_stop"() : () -> ()
    %cst_24 = arith.constant dense<0xFF800000> : vector<1x8xf32>
    %66 = vector.multi_reduction <maximumf>, %65, %cst_24 [2] : vector<1x8x8xf32> to vector<1x8xf32>
    %67 = vector.shape_cast %66 : vector<1x8xf32> to vector<1x8x1xf32>
    %68 = vector.broadcast %67 : vector<1x8x1xf32> to vector<1x8x8xf32>
    %69 = arith.subf %65, %68 : vector<1x8x8xf32>
    %70 = math.exp %69 : vector<1x8x8xf32>
    %cst_25 = arith.constant dense<0.000000e+00> : vector<1x8xf32>
    %71 = vector.multi_reduction <add>, %70, %cst_25 [2] : vector<1x8x8xf32> to vector<1x8xf32>
    %72 = vector.shape_cast %71 : vector<1x8xf32> to vector<1x8x1xf32>
    %73 = tpu.reciprocal %72 {approx = true} : vector<1x8x1xf32> -> vector<1x8x1xf32>
    %74 = vector.broadcast %73 : vector<1x8x1xf32> to vector<1x8x8xf32>
    %75 = arith.mulf %70, %74 : vector<1x8x8xf32>
    "tpu.trace_start"() <{level = 10 : i32, message = "bij,bje->bie"}> : () -> ()
    %cst_26 = arith.constant dense<0.000000e+00> : vector<1x8x8xf32>
    %76 = tpu.matmul %75, %64, %cst_26 {dimension_numbers = #tpu.dot_dimension_numbers<[2], [1], [1], [2], [0, 0, 0, 1, 1, 2], [0], [0]>} : vector<1x8x8xf32>, vector<1x8x8xf32>, vector<1x8x8xf32> -> vector<1x8x8xf32>
    "tpu.trace_stop"() : () -> ()
    %77 = vector.shape_cast %76 : vector<1x8x8xf32> to vector<8x8xf32>
    %c24 = arith.constant 24 : index
    %c0_27 = arith.constant 0 : index
    %78 = vector.load %arg3[%c24, %c0_27] : memref<32x128xf32, #tpu.memory_space<vmem>>, vector<8x128xf32>
    %cst_28 = arith.constant dense<0.000000e+00> : vector<8x128xf32>
    %79 = tpu.matmul %77, %78, %cst_28 {dimension_numbers = #tpu.dot_dimension_numbers<[1], [0], [0], [1], [0, 0, 1, 1], [], []>} : vector<8x8xf32>, vector<8x128xf32>, vector<8x128xf32> -> vector<8x128xf32>
    %80 = arith.addf %61, %79 : vector<8x128xf32>
    %c0_29 = arith.constant 0 : index
    %c0_30 = arith.constant 0 : index
    %81 = vector.load %arg4[%c0_29, %c0_30] : memref<1x128xf32, #tpu.memory_space<vmem>>, vector<1x128xf32>
    %82 = vector.broadcast %81 : vector<1x128xf32> to vector<8x128xf32>
    %83 = arith.addf %80, %82 : vector<8x128xf32>
    %c0_31 = arith.constant 0 : index
    %c0_32 = arith.constant 0 : index
    %84 = vector.load %arg5[%c0_31, %c0_32] : memref<8x128xf32, #tpu.memory_space<vmem>>, vector<8x128xf32>
    tpu.vector_store %arg5[%c0_31, %c0_32], %83 {strides = array<i32>} : memref<8x128xf32, #tpu.memory_space<vmem>>, vector<8x128xf32>,
    return
  }
  func.func @transform_0(%arg0: i32) -> (i32, i32) {
    %c0_i32 = arith.constant 0 : i32
    %c0_i32_0 = arith.constant 0 : i32
    return %arg0, %c0_i32 : i32, i32
  }
  func.func @transform_1(%arg0: i32) -> (i32, i32) {
    %c0_i32 = arith.constant 0 : i32
    %c0_i32_0 = arith.constant 0 : i32
    %c0_i32_1 = arith.constant 0 : i32
    return %c0_i32, %c0_i32_0 : i32, i32
  }
  func.func @transform_2(%arg0: i32) -> (i32, i32) {
    %c0_i32 = arith.constant 0 : i32
    %c0_i32_0 = arith.constant 0 : i32
    %c0_i32_1 = arith.constant 0 : i32
    return %c0_i32, %c0_i32_0 : i32, i32
  }
  func.func @transform_3(%arg0: i32) -> (i32, i32) {
    %c0_i32 = arith.constant 0 : i32
    %c0_i32_0 = arith.constant 0 : i32
    %c0_i32_1 = arith.constant 0 : i32
    return %c0_i32, %c0_i32_0 : i32, i32
  }
  func.func @transform_4(%arg0: i32) -> (i32, i32) {
    %c0_i32 = arith.constant 0 : i32
    %c0_i32_0 = arith.constant 0 : i32
    return %arg0, %c0_i32 : i32, i32
  }
}

</mosaic_0001>

<llo_original>
// kernel: tpu_custom_call.1
$region0: #{tpu_custom_call.1}
  #allocation0 [shape = 'u32[]', space=smem, size = 0x4, offset = 0x4, fixed_abs, tag = 'smem constant byte address 0x4 - core index']
  #allocation1 [shape = 'u32[72,128]{1,0:T(1,128)}', space=vmem, size = 0x9000, scoped, tag = 'internal scratch']
  %s0 = inlined_call_operand.vmem [shape: f32[16,128], index: 0, kind: input, shape index: {}]
  %s1 = inlined_call_operand.vmem [shape: f32[128,96], index: 1, kind: input, shape index: {}]
  %s2 = inlined_call_operand.vmem [shape: f32[32,128], index: 2, kind: input, shape index: {}]
  %s3 = inlined_call_operand.vmem [shape: f32[1,128], index: 3, kind: input, shape index: {}]
  %s4 = inlined_call_operand.hbm [shape: f32[16,128], index: 4, kind: output, shape index: {}]
  %s5 = sld [smem:[#allocation0]]
  $region49: #{tpu_custom_call.1} parent=0
    _
  %s7 = ssub.s32 1, %s5
  %s8 = scalar_select 0, %s7, %s5
  $region1: #{tpu_custom_call.1} parent=0
    #allocation2 [shape = 'u8[8192]{0}', space=vmem, size = 0x2000, scoped, tag = 'output window, operand 0']
    #allocation3 [shape = 's32[2]{0}', space=sflag, size = 0x8, scoped, tag = 'scoped memory for tpu_custom_call.1']
    %9 = vsyncpa [#allocation3], 0
    %s10 = scalar_lea.sflag [#allocation3], 1
    %11 = vsyncpa %s10, 0
    loop: start=0, step=1, limit=4
    $region2: #{tpu_custom_call.1} parent=1 // loop_pre_header
      _
    $region3: #{tpu_custom_call.1} parent=1 // loop_header
      %s13 = sphi 0, %s17
      %p14 = scmp.ge.s32.totalorder %s13, 4
      %s23 = sphi 0, %s25
      %s26 = sphi 0, %s23
      %s27 = sphi 0, %s26
      %s43 = sphi 0, %s27
      %s47 = sphi 0, %s47
      %s49 = sphi 0, %s47
      %s50 = sphi 0, %s49
      %s64 = sphi 0, %s50
      %s68 = sphi 0, %s68
      %s70 = sphi 0, %s68
      %s71 = sphi 0, %s70
      %s85 = sphi 0, %s71
      %s89 = sphi 0, %s89
      %s91 = sphi 0, %s89
      %s92 = sphi 0, %s91
      %s106 = sphi 0, %s92
      %s112 = sphi 0, %s114
      %s115 = sphi 0, %s112
      %s116 = sphi 0, %s115
      %s132 = sphi 0, %s116
    $region4: #{tpu_custom_call.1} parent=1 // loop_header_branch
      %16 = sbr.rel (%p14) target = $region8
    $region5: #{tpu_custom_call.1} parent=1 // loop_body
      %s18 = ssub.s32 %s13, 1
      %s19 = ssub.s32 %s13, 2
      %s20 = sadd.s32 %s13, 1
      %s21 = ssub.s32 %s13, %s20
      %p22 = scmp.eq.s32.totalorder %s21, 0
      %s24 = sadd.s32 %s23, 1
      %s25 = scalar_select %p22, %s23, %s24
      %p28 = pneg %p22
      %p29 = scmp.eq.s32.totalorder %s13, 1
      %p30 = por %p28, %p29
      %p31 = scmp.ne.s32.totalorder %s23, %s26
      %p32 = scmp.eq.s32.totalorder %s13, 0
      %p33 = por %p31, %p32
      %p34 = scmp.ne.s32.totalorder %s23, %s26
      %p35 = scmp.eq.s32.totalorder %s18, 1
      %p36 = por %p34, %p35
      %p37 = scmp.ne.s32.totalorder %s26, %s27
      %p38 = scmp.eq.s32.totalorder %s18, 0
      %p39 = por %p37, %p38
      %p40 = scmp.ne.s32.totalorder %s26, %s27
      %p41 = scmp.eq.s32.totalorder %s19, 1
      %p42 = por %p40, %p41
      %p44 = scmp.ne.s32.totalorder %s27, %s43
      %p45 = scmp.eq.s32.totalorder %s19, 0
      %p46 = por %p44, %p45
      %s48 = sadd.s32 %s47, 1
      %p51 = scmp.eq.s32.totalorder %s13, 1
      %p52 = scmp.ne.s32.totalorder %s47, %s49
      %p53 = scmp.eq.s32.totalorder %s13, 0
      %p54 = por %p52, %p53
      %p55 = scmp.ne.s32.totalorder %s47, %s49
      %p56 = scmp.eq.s32.totalorder %s18, 1
      %p57 = por %p55, %p56
      %p58 = scmp.ne.s32.totalorder %s49, %s50
      %p59 = scmp.eq.s32.totalorder %s18, 0
      %p60 = por %p58, %p59
      %p61 = scmp.ne.s32.totalorder %s49, %s50
      %p62 = scmp.eq.s32.totalorder %s19, 1
      %p63 = por %p61, %p62
      %p65 = scmp.ne.s32.totalorder %s50, %s64
      %p66 = scmp.eq.s32.totalorder %s19, 0
      %p67 = por %p65, %p66
      %s69 = sadd.s32 %s68, 1
      %p72 = scmp.eq.s32.totalorder %s13, 1
      %p73 = scmp.ne.s32.totalorder %s68, %s70
      %p74 = scmp.eq.s32.totalorder %s13, 0
      %p75 = por %p73, %p74
      %p76 = scmp.ne.s32.totalorder %s68, %s70
      %p77 = scmp.eq.s32.totalorder %s18, 1
      %p78 = por %p76, %p77
      %p79 = scmp.ne.s32.totalorder %s70, %s71
      %p80 = scmp.eq.s32.totalorder %s18, 0
      %p81 = por %p79, %p80
      %p82 = scmp.ne.s32.totalorder %s70, %s71
      %p83 = scmp.eq.s32.totalorder %s19, 1
      %p84 = por %p82, %p83
      %p86 = scmp.ne.s32.totalorder %s71, %s85
      %p87 = scmp.eq.s32.totalorder %s19, 0
      %p88 = por %p86, %p87
      %s90 = sadd.s32 %s89, 1
      %p93 = scmp.eq.s32.totalorder %s13, 1
      %p94 = scmp.ne.s32.totalorder %s89, %s91
      %p95 = scmp.eq.s32.totalorder %s13, 0
      %p96 = por %p94, %p95
      %p97 = scmp.ne.s32.totalorder %s89, %s91
      %p98 = scmp.eq.s32.totalorder %s18, 1
      %p99 = por %p97, %p98
      %p100 = scmp.ne.s32.totalorder %s91, %s92
      %p101 = scmp.eq.s32.totalorder %s18, 0
      %p102 = por %p100, %p101
      %p103 = scmp.ne.s32.totalorder %s91, %s92
      %p104 = scmp.eq.s32.totalorder %s19, 1
      %p105 = por %p103, %p104
      %p107 = scmp.ne.s32.totalorder %s92, %s106
      %p108 = scmp.eq.s32.totalorder %s19, 0
      %p109 = por %p107, %p108
      %s110 = ssub.s32 %s13, %s20
      %p111 = scmp.eq.s32.totalorder %s110, 0
      %s113 = sadd.s32 %s112, 1
      %s114 = scalar_select %p111, %s112, %s113
      %p117 = pneg %p111
      %p118 = scmp.eq.s32.totalorder %s13, 1
      %p119 = por %p117, %p118
      %p120 = scmp.ne.s32.totalorder %s112, %s115
      %p121 = scmp.eq.s32.totalorder %s13, 0
      %p122 = por %p120, %p121
      %p123 = scmp.ne.s32.totalorder %s112, %s115
      %p124 = scmp.eq.s32.totalorder %s18, 1
      %p125 = por %p123, %p124
      %p126 = scmp.ne.s32.totalorder %s115, %s116
      %p127 = scmp.eq.s32.totalorder %s18, 0
      %p128 = por %p126, %p127
      %p129 = scmp.ne.s32.totalorder %s115, %s116
      %p130 = scmp.eq.s32.totalorder %s19, 1
      %p131 = por %p129, %p130
      %p133 = scmp.ne.s32.totalorder %s116, %s132
      %p134 = scmp.eq.s32.totalorder %s19, 0
      %p135 = por %p133, %p134
      %p136 = scmp.le.s32.totalorder 1, %s13
      %p137 = scmp.lt.s32.totalorder %s13, 3
      %p138 = pnand %p136, %p137
      %p139 = pneg %p138
      // Predicated region
      $region9: #{tpu_custom_call.1} parent=5 // pred_check
        _
      $region10: #{tpu_custom_call.1} parent=5 // pred_check_branch
        %141 = sbr.rel (%p138) target = $region12
      $region11: #{tpu_custom_call.1} parent=5 // pred_region
        %s142 = ssub.s32 %s13, 1
        // Predicated region
        $region13: #{tpu_custom_call.1} parent=11 // pred_check
          %p143 = pneg %p60
        $region14: #{tpu_custom_call.1} parent=11 // pred_check_branch
          %145 = sbr.rel (%p143) target = $region16
        $region15: #{tpu_custom_call.1} parent=11 // pred_region
          _
        $region16: #{tpu_custom_call.1} parent=11 // pred_fallthru
          _
        // Predicated region
        $region17: #{tpu_custom_call.1} parent=11 // pred_check
          %p146 = pneg %p81
        $region18: #{tpu_custom_call.1} parent=11 // pred_check_branch
          %148 = sbr.rel (%p146) target = $region20
        $region19: #{tpu_custom_call.1} parent=11 // pred_region
          _
        $region20: #{tpu_custom_call.1} parent=11 // pred_fallthru
          _
        // Predicated region
        $region21: #{tpu_custom_call.1} parent=11 // pred_check
          %p149 = pneg %p102
        $region22: #{tpu_custom_call.1} parent=11 // pred_check_branch
          %151 = sbr.rel (%p149) target = $region24
        $region23: #{tpu_custom_call.1} parent=11 // pred_region
          _
        $region24: #{tpu_custom_call.1} parent=11 // pred_fallthru
          _
      $region12: #{tpu_custom_call.1} parent=5 // pred_fallthru
        _
      %p152 = scmp.lt.s32.totalorder %s13, 2
      // Predicated region
      $region25: #{tpu_custom_call.1} parent=5 // pred_check
        %p153 = pneg %p152
      $region26: #{tpu_custom_call.1} parent=5 // pred_check_branch
        %155 = sbr.rel (%p153) target = $region28
      $region27: #{tpu_custom_call.1} parent=5 // pred_region
        // Predicated region
        $region29: #{tpu_custom_call.1} parent=27 // pred_check
          %p156 = pneg %p33
        $region30: #{tpu_custom_call.1} parent=27 // pred_check_branch
          %158 = sbr.rel (%p156) target = $region32
        $region31: #{tpu_custom_call.1} parent=27 // pred_region
          %p159 = scmp.lt.s32.totalorder %s13, 1
          %s160 = scalar_select %p159, %s13, 1
          %s161 = smul.addr %s160, 8
          %s162 = scalar_lea.vmem %s0, %s161
        $region32: #{tpu_custom_call.1} parent=27 // pred_fallthru
          _
      $region28: #{tpu_custom_call.1} parent=5 // pred_fallthru
        _
      %p163 = scmp.le.s32.totalorder 1, %s13
      %p164 = scmp.lt.s32.totalorder %s13, 3
      %p165 = pnand %p163, %p164
      %p166 = pneg %p165
      // Predicated region
      $region33: #{tpu_custom_call.1} parent=5 // pred_check
        _
      $region34: #{tpu_custom_call.1} parent=5 // pred_check_branch
        %168 = sbr.rel (%p165) target = $region36
      $region35: #{tpu_custom_call.1} parent=5 // pred_region
        %s169 = ssub.s32 %s13, 1
        %p170 = scmp.lt.s32.totalorder %s18, 1
        %s171 = scalar_select %p170, %s18, 1
        %s172 = smul.addr %s171, 8
        %s173 = scalar_lea.vmem %s0, %s172
        %p174 = pneg %p39
        %p175 = pneg %p36
        %p176 = pneg %p60
        %p177 = pneg %p57
        %p178 = pneg %p81
        %p179 = pneg %p78
        %p180 = pneg %p102
        %p181 = pneg %p99
        %p182 = pneg %p128
        %p183 = pneg %p125
        %s184 = sand.u32 %s115, 1
        %s185 = scalar_lea.sflag [#allocation3], %s184
        %s186 = sand.u32 %s115, 1
        %s187 = smul.addr %s186, 8
        %s188 = scalar_lea.vmem [#allocation2], %s187
        %p189 = scmp.lt.s32.totalorder %s18, 1
        %s190 = scalar_select %p189, %s18, 1
        %s191 = smul.addr %s190, 8
        %s192 = scalar_lea.vmem %s0, %s191
        %v193 = vld [vmem:[%s192] sm:$0xff]
        %v194 = vld [vmem:[%s1] sm:$0xff]
        %v195 = vld [vmem:[%s1 + $0x8] sm:$0xff]
        %v196 = vld [vmem:[%s1 + $0x10] sm:$0xff]
        %v197 = vld [vmem:[%s1 + $0x18] sm:$0xff]
        %v198 = vld [vmem:[%s1 + $0x20] sm:$0xff]
        %v199 = vld [vmem:[%s1 + $0x28] sm:$0xff]
        %v200 = vld [vmem:[%s1 + $0x30] sm:$0xff]
        %v201 = vld [vmem:[%s1 + $0x38] sm:$0xff]
        %v202 = vld [vmem:[%s1 + $0x40] sm:$0xff]
        %v203 = vld [vmem:[%s1 + $0x48] sm:$0xff]
        %v204 = vld [vmem:[%s1 + $0x50] sm:$0xff]
        %v205 = vld [vmem:[%s1 + $0x58] sm:$0xff]
        %v206 = vld [vmem:[%s1 + $0x60] sm:$0xff]
        %v207 = vld [vmem:[%s1 + $0x68] sm:$0xff]
        %v208 = vld [vmem:[%s1 + $0x70] sm:$0xff]
        %v209 = vld [vmem:[%s1 + $0x78] sm:$0xff]
        %210 = vmatpush.msra.mxu0 %v209
        %211 = vmatpush.msra.mxu0 %v208
        %212 = vmatpush.msra.mxu0 %v207
        %213 = vmatpush.msra.mxu0 %v206
        %214 = vmatpush.msra.mxu0 %v205
        %215 = vmatpush.msra.mxu0 %v204
        %216 = vmatpush.msra.mxu0 %v203
        %217 = vmatpush.msra.mxu0 %v202
        %218 = vmatpush.msra.mxu0 %v201
        %219 = vmatpush.msra.mxu0 %v200
        %220 = vmatpush.msra.mxu0 %v199
        %221 = vmatpush.msra.mxu0 %v198
        %222 = vmatpush.msra.mxu0 %v197
        %223 = vmatpush.msra.mxu0 %v196
        %224 = vmatpush.msra.mxu0 %v195
        %225 = vmatpush.msra.mxu0 %v194
        %226 = vmatmul.f32.gmra.mxu0 %v193
        %v227 = vpop.f32.mrf.mxu0
        %v228 = vadd.f32 0.0, %v227
        %229 = vdwg.mxu0
        %231 = vrot.lane.b32.xlu0 %v228, 96
        %v232 = vpop.permute.xlu0 %231
        %vm233 = vcmask 64512
        %v234 = vsel %vm233, %v228, 0
        %v236 = vsel %vm233, %v232, 0
        %238 = vmatpush.xpose.msra.mxu0 0.0
        %239 = vmatpush.xpose.msra.mxu0 0.0
        %240 = vmatpush.xpose.msra.mxu0 0.0
        %241 = vmatpush.xpose.msra.mxu0 0.0
        %242 = vmatpush.xpose.msra.mxu0 0.0
        %243 = vmatpush.xpose.msra.mxu0 0.0
        %244 = vmatpush.xpose.msra.mxu0 0.0
        %245 = vmatpush.xpose.msra.mxu0 0.0
        %246 = vmatpush.xpose.msra.mxu0 0.0
        %247 = vmatpush.xpose.msra.mxu0 0.0
        %248 = vmatpush.xpose.msra.mxu0 0.0
        %249 = vmatpush.xpose.msra.mxu0 0.0
        %250 = vmatpush.xpose.msra.mxu0 0.0
        %251 = vmatpush.xpose.msra.mxu0 0.0
        %252 = vmatpush.xpose.msra.mxu0 0.0
        %253 = vmatpush.xpose.msra.mxu0 %v236
        %254 = vmatmul.f32.gmra.mxu0 %v234
        %v255 = vpop.f32.mrf.mxu0
        %v256 = vadd.f32 0.0, %v255
        %257 = vdwg.mxu0
        %v258 = vsel %vm233, %v256, -inf
        %259 = vmax.xlane.f32.xlu0 %v258
        %v260 = vpop.xlane.xlu0 %259
        %v261 = vsub.f32 %v256, %v260
        %v262 = vmul.f32 %v261, 1.442695
        %v263 = vpow.pop %v262
        %v264 = vsel %vm233, %v263, 0.0
        %265 = vadd.xlane.f32.xlu0 %v264
        %v266 = vpop.xlane.xlu0 %265
        %v267 = vrcp.pop %v266
        %v268 = vmul.f32 %v263, %v267
        %269 = vrot.lane.b32.xlu0 %v228, 64
        %v270 = vpop.permute.xlu0 %269
        %v273 = vsel %vm233, %v268, 0
        %275 = vmatpush.msra.mxu0 0.0
        %276 = vmatpush.msra.mxu0 0.0
        %277 = vmatpush.msra.mxu0 0.0
        %278 = vmatpush.msra.mxu0 0.0
        %279 = vmatpush.msra.mxu0 0.0
        %280 = vmatpush.msra.mxu0 0.0
        %281 = vmatpush.msra.mxu0 0.0
        %282 = vmatpush.msra.mxu0 0.0
        %283 = vmatpush.msra.mxu0 0.0
        %284 = vmatpush.msra.mxu0 0.0
        %285 = vmatpush.msra.mxu0 0.0
        %286 = vmatpush.msra.mxu0 0.0
        %287 = vmatpush.msra.mxu0 0.0
        %288 = vmatpush.msra.mxu0 0.0
        %289 = vmatpush.msra.mxu0 0.0
        %290 = vmatpush.msra.mxu0 %v270
        %291 = vmatmul.f32.gmra.mxu0 %v273
        %v292 = vpop.f32.mrf.mxu0
        %v293 = vadd.f32 0.0, %v292
        %294 = vdwg.mxu0
        %v295 = vld [vmem:[%s2] sm:$0xff]
        %296 = vrot.lane.b32.xlu0 %v228, 120
        %v297 = vpop.permute.xlu0 %296
        %298 = vrot.lane.b32.xlu0 %v228, 88
        %v299 = vpop.permute.xlu0 %298
        %v300 = vsel %vm233, %v297, 0
        %v302 = vsel %vm233, %v299, 0
        %304 = vmatpush.xpose.msra.mxu0 0.0
        %305 = vmatpush.xpose.msra.mxu0 0.0
        %306 = vmatpush.xpose.msra.mxu0 0.0
        %307 = vmatpush.xpose.msra.mxu0 0.0
        %308 = vmatpush.xpose.msra.mxu0 0.0
        %309 = vmatpush.xpose.msra.mxu0 0.0
        %310 = vmatpush.xpose.msra.mxu0 0.0
        %311 = vmatpush.xpose.msra.mxu0 0.0
        %312 = vmatpush.xpose.msra.mxu0 0.0
        %313 = vmatpush.xpose.msra.mxu0 0.0
        %314 = vmatpush.xpose.msra.mxu0 0.0
        %315 = vmatpush.xpose.msra.mxu0 0.0
        %316 = vmatpush.xpose.msra.mxu0 0.0
        %317 = vmatpush.xpose.msra.mxu0 0.0
        %318 = vmatpush.xpose.msra.mxu0 0.0
        %319 = vmatpush.xpose.msra.mxu0 %v302
        %320 = vmatmul.f32.gmra.mxu0 %v300
        %v321 = vpop.f32.mrf.mxu0
        %v322 = vadd.f32 0.0, %v321
        %323 = vdwg.mxu0
        %v324 = vsel %vm233, %v322, -inf
        %325 = vmax.xlane.f32.xlu0 %v324
        %v326 = vpop.xlane.xlu0 %325
        %v327 = vsub.f32 %v322, %v326
        %v328 = vmul.f32 %v327, 1.442695
        %v329 = vpow.pop %v328
        %v330 = vsel %vm233, %v329, 0.0
        %331 = vadd.xlane.f32.xlu0 %v330
        %v332 = vpop.xlane.xlu0 %331
        %v333 = vrcp.pop %v332
        %v334 = vmul.f32 %v329, %v333
        %335 = vrot.lane.b32.xlu0 %v228, 56
        %v336 = vpop.permute.xlu0 %335
        %v339 = vsel %vm233, %v334, 0
        %341 = vmatpush.msra.mxu0 0.0
        %342 = vmatpush.msra.mxu0 0.0
        %343 = vmatpush.msra.mxu0 0.0
        %344 = vmatpush.msra.mxu0 0.0
        %345 = vmatpush.msra.mxu0 0.0
        %346 = vmatpush.msra.mxu0 0.0
        %347 = vmatpush.msra.mxu0 0.0
        %348 = vmatpush.msra.mxu0 0.0
        %349 = vmatpush.msra.mxu0 0.0
        %350 = vmatpush.msra.mxu0 0.0
        %351 = vmatpush.msra.mxu0 0.0
        %352 = vmatpush.msra.mxu0 0.0
        %353 = vmatpush.msra.mxu0 0.0
        %354 = vmatpush.msra.mxu0 0.0
        %355 = vmatpush.msra.mxu0 0.0
        %356 = vmatpush.msra.mxu0 %v336
        %357 = vmatmul.f32.gmra.mxu0 %v339
        %v358 = vpop.f32.mrf.mxu0
        %v359 = vadd.f32 0.0, %v358
        %360 = vdwg.mxu0
        %v361 = vld [vmem:[%s2 + $0x8] sm:$0xff]
        %v363 = vsel %vm233, %v359, 0
        %365 = vmatpush.msra.mxu0 0.0
        %366 = vmatpush.msra.mxu0 0.0
        %367 = vmatpush.msra.mxu0 0.0
        %368 = vmatpush.msra.mxu0 0.0
        %369 = vmatpush.msra.mxu0 0.0
        %370 = vmatpush.msra.mxu0 0.0
        %371 = vmatpush.msra.mxu0 0.0
        %372 = vmatpush.msra.mxu0 0.0
        %373 = vmatpush.msra.mxu0 0.0
        %374 = vmatpush.msra.mxu0 0.0
        %375 = vmatpush.msra.mxu0 0.0
        %376 = vmatpush.msra.mxu0 0.0
        %377 = vmatpush.msra.mxu0 0.0
        %378 = vmatpush.msra.mxu0 0.0
        %379 = vmatpush.msra.mxu0 0.0
        %380 = vmatpush.msra.mxu0 %v361
        %381 = vmatmul.f32.gmra.mxu0 %v363
        %v382 = vpop.f32.mrf.mxu0
        %v383 = vadd.f32 0.0, %v382
        %384 = vdwg.mxu0
        %v386 = vsel %vm233, %v293, 0
        %388 = vmatpush.msra.mxu0 0.0
        %389 = vmatpush.msra.mxu0 0.0
        %390 = vmatpush.msra.mxu0 0.0
        %391 = vmatpush.msra.mxu0 0.0
        %392 = vmatpush.msra.mxu0 0.0
        %393 = vmatpush.msra.mxu0 0.0
        %394 = vmatpush.msra.mxu0 0.0
        %395 = vmatpush.msra.mxu0 0.0
        %396 = vmatpush.msra.mxu0 0.0
        %397 = vmatpush.msra.mxu0 0.0
        %398 = vmatpush.msra.mxu0 0.0
        %399 = vmatpush.msra.mxu0 0.0
        %400 = vmatpush.msra.mxu0 0.0
        %401 = vmatpush.msra.mxu0 0.0
        %402 = vmatpush.msra.mxu0 0.0
        %403 = vmatpush.msra.mxu0 %v295
        %404 = vmatmul.f32.gmra.mxu0 %v386
        %v405 = vpop.f32.mrf.mxu0
        %v406 = vadd.f32 %v383, %v405
        %407 = vdwg.mxu0
        %408 = vrot.lane.b32.xlu0 %v228, 112
        %v409 = vpop.permute.xlu0 %408
        %410 = vrot.lane.b32.xlu0 %v228, 80
        %v411 = vpop.permute.xlu0 %410
        %v412 = vsel %vm233, %v409, 0
        %v414 = vsel %vm233, %v411, 0
        %416 = vmatpush.xpose.msra.mxu0 0.0
        %417 = vmatpush.xpose.msra.mxu0 0.0
        %418 = vmatpush.xpose.msra.mxu0 0.0
        %419 = vmatpush.xpose.msra.mxu0 0.0
        %420 = vmatpush.xpose.msra.mxu0 0.0
        %421 = vmatpush.xpose.msra.mxu0 0.0
        %422 = vmatpush.xpose.msra.mxu0 0.0
        %423 = vmatpush.xpose.msra.mxu0 0.0
        %424 = vmatpush.xpose.msra.mxu0 0.0
        %425 = vmatpush.xpose.msra.mxu0 0.0
        %426 = vmatpush.xpose.msra.mxu0 0.0
        %427 = vmatpush.xpose.msra.mxu0 0.0
        %428 = vmatpush.xpose.msra.mxu0 0.0
        %429 = vmatpush.xpose.msra.mxu0 0.0
        %430 = vmatpush.xpose.msra.mxu0 0.0
        %431 = vmatpush.xpose.msra.mxu0 %v414
        %432 = vmatmul.f32.gmra.mxu0 %v412
        %v433 = vpop.f32.mrf.mxu0
        %v434 = vadd.f32 0.0, %v433
        %435 = vdwg.mxu0
        %v436 = vsel %vm233, %v434, -inf
        %437 = vmax.xlane.f32.xlu0 %v436
        %v438 = vpop.xlane.xlu0 %437
        %v439 = vsub.f32 %v434, %v438
        %v440 = vmul.f32 %v439, 1.442695
        %v441 = vpow.pop %v440
        %v442 = vsel %vm233, %v441, 0.0
        %443 = vadd.xlane.f32.xlu0 %v442
        %v444 = vpop.xlane.xlu0 %443
        %v445 = vrcp.pop %v444
        %v446 = vmul.f32 %v441, %v445
        %447 = vrot.lane.b32.xlu0 %v228, 48
        %v448 = vpop.permute.xlu0 %447
        %v451 = vsel %vm233, %v446, 0
        %453 = vmatpush.msra.mxu0 0.0
        %454 = vmatpush.msra.mxu0 0.0
        %455 = vmatpush.msra.mxu0 0.0
        %456 = vmatpush.msra.mxu0 0.0
        %457 = vmatpush.msra.mxu0 0.0
        %458 = vmatpush.msra.mxu0 0.0
        %459 = vmatpush.msra.mxu0 0.0
        %460 = vmatpush.msra.mxu0 0.0
        %461 = vmatpush.msra.mxu0 0.0
        %462 = vmatpush.msra.mxu0 0.0
        %463 = vmatpush.msra.mxu0 0.0
        %464 = vmatpush.msra.mxu0 0.0
        %465 = vmatpush.msra.mxu0 0.0
        %466 = vmatpush.msra.mxu0 0.0
        %467 = vmatpush.msra.mxu0 0.0
        %468 = vmatpush.msra.mxu0 %v448
        %469 = vmatmul.f32.gmra.mxu0 %v451
        %v470 = vpop.f32.mrf.mxu0
        %v471 = vadd.f32 0.0, %v470
        %472 = vdwg.mxu0
        %v473 = vld [vmem:[%s2 + $0x10] sm:$0xff]
        %v475 = vsel %vm233, %v471, 0
        %477 = vmatpush.msra.mxu0 0.0
        %478 = vmatpush.msra.mxu0 0.0
        %479 = vmatpush.msra.mxu0 0.0
        %480 = vmatpush.msra.mxu0 0.0
        %481 = vmatpush.msra.mxu0 0.0
        %482 = vmatpush.msra.mxu0 0.0
        %483 = vmatpush.msra.mxu0 0.0
        %484 = vmatpush.msra.mxu0 0.0
        %485 = vmatpush.msra.mxu0 0.0
        %486 = vmatpush.msra.mxu0 0.0
        %487 = vmatpush.msra.mxu0 0.0
        %488 = vmatpush.msra.mxu0 0.0
        %489 = vmatpush.msra.mxu0 0.0
        %490 = vmatpush.msra.mxu0 0.0
        %491 = vmatpush.msra.mxu0 0.0
        %492 = vmatpush.msra.mxu0 %v473
        %493 = vmatmul.f32.gmra.mxu0 %v475
        %v494 = vpop.f32.mrf.mxu0
        %v495 = vadd.f32 0.0, %v494
        %496 = vdwg.mxu0
        %v497 = vadd.f32 %v406, %v495
        %498 = vrot.lane.b32.xlu0 %v228, 104
        %v499 = vpop.permute.xlu0 %498
        %500 = vrot.lane.b32.xlu0 %v228, 72
        %v501 = vpop.permute.xlu0 %500
        %v502 = vsel %vm233, %v499, 0
        %v504 = vsel %vm233, %v501, 0
        %506 = vmatpush.xpose.msra.mxu0 0.0
        %507 = vmatpush.xpose.msra.mxu0 0.0
        %508 = vmatpush.xpose.msra.mxu0 0.0
        %509 = vmatpush.xpose.msra.mxu0 0.0
        %510 = vmatpush.xpose.msra.mxu0 0.0
        %511 = vmatpush.xpose.msra.mxu0 0.0
        %512 = vmatpush.xpose.msra.mxu0 0.0
        %513 = vmatpush.xpose.msra.mxu0 0.0
        %514 = vmatpush.xpose.msra.mxu0 0.0
        %515 = vmatpush.xpose.msra.mxu0 0.0
        %516 = vmatpush.xpose.msra.mxu0 0.0
        %517 = vmatpush.xpose.msra.mxu0 0.0
        %518 = vmatpush.xpose.msra.mxu0 0.0
        %519 = vmatpush.xpose.msra.mxu0 0.0
        %520 = vmatpush.xpose.msra.mxu0 0.0
        %521 = vmatpush.xpose.msra.mxu0 %v504
        %522 = vmatmul.f32.gmra.mxu0 %v502
        %v523 = vpop.f32.mrf.mxu0
        %v524 = vadd.f32 0.0, %v523
        %525 = vdwg.mxu0
        %v526 = vsel %vm233, %v524, -inf
        %527 = vmax.xlane.f32.xlu0 %v526
        %v528 = vpop.xlane.xlu0 %527
        %v529 = vsub.f32 %v524, %v528
        %v530 = vmul.f32 %v529, 1.442695
        %v531 = vpow.pop %v530
        %v532 = vsel %vm233, %v531, 0.0
        %533 = vadd.xlane.f32.xlu0 %v532
        %v534 = vpop.xlane.xlu0 %533
        %v535 = vrcp.pop %v534
        %v536 = vmul.f32 %v531, %v535
        %537 = vrot.lane.b32.xlu0 %v228, 40
        %v538 = vpop.permute.xlu0 %537
        %v541 = vsel %vm233, %v536, 0
        %543 = vmatpush.msra.mxu0 0.0
        %544 = vmatpush.msra.mxu0 0.0
        %545 = vmatpush.msra.mxu0 0.0
        %546 = vmatpush.msra.mxu0 0.0
        %547 = vmatpush.msra.mxu0 0.0
        %548 = vmatpush.msra.mxu0 0.0
        %549 = vmatpush.msra.mxu0 0.0
        %550 = vmatpush.msra.mxu0 0.0
        %551 = vmatpush.msra.mxu0 0.0
        %552 = vmatpush.msra.mxu0 0.0
        %553 = vmatpush.msra.mxu0 0.0
        %554 = vmatpush.msra.mxu0 0.0
        %555 = vmatpush.msra.mxu0 0.0
        %556 = vmatpush.msra.mxu0 0.0
        %557 = vmatpush.msra.mxu0 0.0
        %558 = vmatpush.msra.mxu0 %v538
        %559 = vmatmul.f32.gmra.mxu0 %v541
        %v560 = vpop.f32.mrf.mxu0
        %v561 = vadd.f32 0.0, %v560
        %562 = vdwg.mxu0
        %v563 = vld [vmem:[%s2 + $0x18] sm:$0xff]
        %v565 = vsel %vm233, %v561, 0
        %567 = vmatpush.msra.mxu0 0.0
        %568 = vmatpush.msra.mxu0 0.0
        %569 = vmatpush.msra.mxu0 0.0
        %570 = vmatpush.msra.mxu0 0.0
        %571 = vmatpush.msra.mxu0 0.0
        %572 = vmatpush.msra.mxu0 0.0
        %573 = vmatpush.msra.mxu0 0.0
        %574 = vmatpush.msra.mxu0 0.0
        %575 = vmatpush.msra.mxu0 0.0
        %576 = vmatpush.msra.mxu0 0.0
        %577 = vmatpush.msra.mxu0 0.0
        %578 = vmatpush.msra.mxu0 0.0
        %579 = vmatpush.msra.mxu0 0.0
        %580 = vmatpush.msra.mxu0 0.0
        %581 = vmatpush.msra.mxu0 0.0
        %582 = vmatpush.msra.mxu0 %v563
        %583 = vmatmul.f32.gmra.mxu0 %v565
        %v584 = vpop.f32.mrf.mxu0
        %v585 = vadd.f32 0.0, %v584
        %586 = vdwg.mxu0
        %v587 = vadd.f32 %v497, %v585
        %v588 = vld [vmem:[%s3] sm:$0x1]
        %v590 = vperm.slane %v588, 0
        %v592 = vadd.f32 %v587, %v590
        %593 = vst [vmem:[%s188] sm:$0xff] %v592
        %s594 = sand.u32 %s115, 1
        %s595 = scalar_lea.sflag [#allocation3], %s594
        %s596 = sand.u32 %s115, 1
        %s597 = smul.addr %s596, 8
        %s598 = scalar_lea.vmem [#allocation2], %s597
        // Predicated region
        $region37: #{tpu_custom_call.1} parent=35 // pred_check
          %p599 = pneg %p125
        $region38: #{tpu_custom_call.1} parent=35 // pred_check_branch
          %601 = sbr.rel (%p599) target = $region40
        $region39: #{tpu_custom_call.1} parent=35 // pred_region
          %603 = vsyncadd %s595, 0
          %s604 = smul.addr %s18, 8
          %s605 = scalar_lea.hbm %s4, %s604
          %s607 = sshll.u32 %s598, 4
          %s608 = int_to_ptr.vmem [resolvable:$true] %s607
          %s609 = sshll.u32 %s605, 4
          %s610 = int_to_ptr.hbm [resolvable:$true] %s609
          %612 = dma.vmem_to_hbm [thread:$0]  %s608, 128, %s610, %s595
        $region40: #{tpu_custom_call.1} parent=35 // pred_fallthru
          _
      $region36: #{tpu_custom_call.1} parent=5 // pred_fallthru
        _
      %p613 = scmp.le.s32.totalorder 2, %s13
      // Predicated region
      $region41: #{tpu_custom_call.1} parent=5 // pred_check
        %p614 = pneg %p613
      $region42: #{tpu_custom_call.1} parent=5 // pred_check_branch
        %616 = sbr.rel (%p614) target = $region44
      $region43: #{tpu_custom_call.1} parent=5 // pred_region
        %s617 = ssub.s32 %s13, 2
        // Predicated region
        $region45: #{tpu_custom_call.1} parent=43 // pred_check
          %p618 = pneg %p131
        $region46: #{tpu_custom_call.1} parent=43 // pred_check_branch
          %620 = sbr.rel (%p618) target = $region48
        $region47: #{tpu_custom_call.1} parent=43 // pred_region
          %s621 = sand.u32 %s116, 1
          %s622 = scalar_lea.sflag [#allocation3], %s621
          %s623 = sand.u32 %s116, 1
          %s624 = smul.addr %s623, 8
          %s625 = scalar_lea.vmem [#allocation2], %s624
          %627 = dma.done %s622, 128
        $region48: #{tpu_custom_call.1} parent=43 // pred_fallthru
          _
      $region44: #{tpu_custom_call.1} parent=5 // pred_fallthru
        _
    $region6: #{tpu_custom_call.1} parent=1 // loop_footer
      %s17 = sadd.s32 1, %s13
    $region7: #{tpu_custom_call.1} parent=1 // loop_footer_branch
      %12 = sbr.rel target = $region3
    $region8: #{tpu_custom_call.1} parent=1 // loop_exit
      _
    %628 = vsyncpa [#allocation3], 1
    %s629 = scalar_lea.sflag [#allocation3], 1
    %630 = vsyncpa %s629, 1

</llo_original>
